<compile_context>
chip_gen: v5e
topology: v5e:2x2
jax: 0.10.0
libtpu: 0.0.40
codegen_flags: <defaults>
</compile_context>

<pallas_src>
import jax
import jax.numpy as jnp
from jax.experimental import pallas as pl
from jax.experimental.pallas import tpu as pltpu


def _cross_window_attn_kernel(xq_ref, xkv_ref, w_all_ref, wp_ref, bp_ref,
                              mask_ref, out_ref):
    # xq_ref:    (TB, Nq,  C)            xkv_ref: (TB, Nkv, C)
    # w_all_ref: (C, 3C) bf16  [q|k|v] fused, scale folded into q columns
    # wp_ref:    (C, C)  bf16            bp_ref:  (1, C) f32
    # mask_ref:  (H*Nkv, C) bf16, mask[h*Nkv + k, c] = (c // head_dim == h)
    # out_ref:   (TB, Nq, C)
    TB, Nq, C = xq_ref.shape
    _, Nkv, _ = xkv_ref.shape
    KT = mask_ref.shape[0]              # num_heads * Nkv (lane-dense axis)
    H = KT // Nkv

    f32 = jnp.float32
    bf16 = jnp.bfloat16

    # ---- fused q/k/v projection: ONE (rows, C) @ (C, 3C) matmul ------------
    # Cast the activation block to bf16 once in VMEM (no wrapper HBM round
    # trip); query and key/value rows are stacked along the sublane dim so a
    # single N=3C MXU push serves all three projections.
    xq = xq_ref[...].astype(bf16).reshape(TB * Nq, C)
    xkv = xkv_ref[...].astype(bf16).reshape(TB * Nkv, C)
    x_all = jnp.concatenate([xq, xkv], axis=0)              # (TB*(Nq+Nkv), C)

    qkv = jnp.dot(x_all, w_all_ref[...], preferred_element_type=f32)
    q2d = qkv[:TB * Nq, 0:C]                    # scale already folded into W
    k2d = qkv[TB * Nq:, C:2 * C]
    v2d = qkv[TB * Nq:, 2 * C:3 * C]

    q3 = q2d.astype(bf16).reshape(TB, Nq, C)
    k3 = k2d.astype(bf16).reshape(TB, Nkv, C)
    v3 = v2d.astype(bf16).reshape(TB, Nkv, C)

    mask = mask_ref[...]                                     # (KT, C) bf16 0/1

    # ---- all heads in one batched contraction (block-diagonal K / V) -------
    # Kblock[b, h*Nkv + k, c] = k3[b, k, c] * (c // D == h).  All heads' keys
    # sit side by side in the lane dim (KT lanes); the contraction depth is
    # the full C instead of head_dim, so there are no 4-lane head slices and
    # no per-head MXU pushes (single repack, bounded live ranges).
    kblock = jnp.concatenate([k3] * H, axis=1) * mask        # (TB, KT, C)
    vblock = jnp.concatenate([v3] * H, axis=1) * mask        # (TB, KT, C)

    # Scores for every head at once: s[b, q, h*Nkv + k] = <q_h[b,q], k_h[b,k]>
    s = jnp.einsum('bqc,bkc->bqk', q3, kblock,
                   preferred_element_type=f32)               # (TB, Nq, KT) f32
    # Row-global max: softmax is shift invariant within each head's segment
    # as long as the shift is constant per (b, q) row.  (An exact per-head max
    # would only matter if one head's scores trail another's by ~88.)
    s = s - jnp.max(s, axis=-1, keepdims=True)
    p = jnp.exp(s)                                           # f32 softmax math
    p_b = p.astype(bf16)

    # Unnormalised context; channels come out already interleaved as (.., C),
    # so no per-head scatter into a scratch buffer (no masked vst) is needed.
    ctx = jnp.einsum('bqk,bkc->bqc', p_b, vblock,
                     preferred_element_type=f32)             # (TB, Nq, C) f32
    ctx2d = ctx.reshape(TB * Nq, C)

    # Per-head softmax denominators, broadcast over each head's D channels by
    # the same 0/1 mask matrix: denom[r, c] = sum_{k in segment c//D} p[r, k].
    denom = jnp.dot(p_b.reshape(TB * Nq, KT), mask,
                    preferred_element_type=f32)              # (TB*Nq, C) f32
    # Guard 0/0 only in padded batch rows of a ragged last block (their
    # outputs are dropped anyway); never active for real rows.
    denom = jnp.maximum(denom, jnp.float32(1e-30))
    attn = ctx2d * pl.reciprocal(denom, approx=True)

    # ---- output projection --------------------------------------------------
    out = jnp.dot(attn.astype(bf16), wp_ref[...], preferred_element_type=f32)
    out = out + bp_ref[...]
    out_ref[...] = out.reshape(TB, Nq, C).astype(out_ref.dtype)

    # TODO(synk): the optional attention `mask` argument and attn/proj dropout
    # are not implemented (forward default: mask=None, eval / p=0.0).


def cross_window_attention(x_q, x_kv, wq, wkv, wproj, bproj, *,
                           num_heads, batch_tile=None):
    B, Nq, C = x_q.shape
    _, Nkv, _ = x_kv.shape
    H = num_heads
    D = C // H
    KT = H * Nkv
    scale = D ** (-0.5)
    itemsize = x_q.dtype.itemsize

    # Fused projection weight (C, 3C) = [Wq * scale | Wk | Wv], bf16 operands
    # (the scale multiply fuses into the cast already being done -> free).
    w_all = jnp.concatenate([wq * scale, wkv], axis=1).astype(jnp.bfloat16)
    wp_bf = wproj.astype(jnp.bfloat16)
    bp2d = bproj.reshape(1, C).astype(jnp.float32)

    # Block-diagonal head mask (doubles as the per-head segment-sum matrix):
    # mask[h*Nkv + k, c] = 1 iff channel c belongs to head h.
    mask = (jnp.arange(KT)[:, None] // Nkv ==
            jnp.arange(C)[None, :] // D).astype(jnp.bfloat16)

    # ---- batch tile selection ----------------------------------------------
    # Rough per-batch-element VMEM working set (double-buffered I/O blocks plus
    # the f32/bf16 intermediates built in the kernel).
    per_b = ((Nq + Nkv) * C * (2 * itemsize + 12)   # in blocks + fused qkv f32
             + 4 * KT * C                           # bf16 block-diag K / V
             + 6 * Nq * KT                          # f32 scores + bf16 probs
             + Nq * C * (16 + 2 * itemsize))        # ctx/denom/attn + out block
    if batch_tile is None:
        budget = 24 << 20                           # ~half of a 48 MiB VMEM cap
        batch_tile = max(1, min(B, budget // max(per_b, 1)))
        # For large B keep >= 2 grid steps so the 'parallel' axis can shard
        # across the two v7x TensorCores; an extra step is noise on the
        # single-core v5e/v6e, and for small B one step minimises overhead.
        half = pl.cdiv(B, 2)
        if half * Nq >= 256 and batch_tile > half:
            batch_tile = half
    TB = max(1, min(batch_tile, B))
    num_blocks = pl.cdiv(B, TB)
    # If B % TB != 0 the last block reads padded rows; all math is row-local
    # and out-of-range writes are dropped, so valid rows stay exact.

    # Explicit VMEM budget, clipped to 48 MiB so the same tiling leaves
    # headroom under v7x's 64 MiB physical VMEM.
    const_bytes = (3 * C * C + C * C + KT * C) * 2 + C * 4
    vmem_limit = int(min(max(2 * (TB * per_b + const_bytes) + (4 << 20),
                             16 << 20), 48 << 20))

    flops = 2 * (B * (Nq + Nkv) * C * 3 * C      # fused projection
                 + B * Nq * C * KT               # scores (all heads)
                 + 2 * B * Nq * KT * C           # context + denominators
                 + B * Nq * C * C)               # output projection
    bytes_accessed = ((B * (Nq + Nkv) * C + B * Nq * C) * itemsize
                      + (4 * C * C + KT * C) * 2 + C * 4)
    cost = pl.CostEstimate(flops=int(flops),
                           transcendentals=int(B * Nq * KT),
                           bytes_accessed=int(bytes_accessed))

    return pl.pallas_call(
        _cross_window_attn_kernel,
        out_shape=jax.ShapeDtypeStruct((B, Nq, C), x_q.dtype),
        grid_spec=pltpu.PrefetchScalarGridSpec(
            num_scalar_prefetch=0,
            grid=(num_blocks,),
            in_specs=[
                pl.BlockSpec((TB, Nq, C), lambda b: (b, 0, 0)),
                pl.BlockSpec((TB, Nkv, C), lambda b: (b, 0, 0)),
                # Constant-index weight / mask blocks (at C=32 double-buffering
                # them is noise; for much larger C consider pl.Buffered(1)).
                pl.BlockSpec((C, 3 * C), lambda b: (0, 0)),
                pl.BlockSpec((C, C), lambda b: (0, 0)),
                pl.BlockSpec((1, C), lambda b: (0, 0)),
                pl.BlockSpec((KT, C), lambda b: (0, 0)),
            ],
            out_specs=pl.BlockSpec((TB, Nq, C), lambda b: (b, 0, 0)),
        ),
        compiler_params=pltpu.CompilerParams(
            dimension_semantics=("parallel",),
            vmem_limit_bytes=vmem_limit),
        cost_estimate=cost,
    )(x_q, x_kv, w_all, wp_bf, bp2d, mask)


def _reference(x_q, x_kv, wq, wkv, wproj, bproj, *, num_heads):
    """Pure-JAX f32 reference matching the PyTorch forward (mask=None)."""
    B, Nq, C = x_q.shape
    _, Nkv, _ = x_kv.shape
    D = C // num_heads
    scale = D ** (-0.5)

    q = (x_q @ wq).reshape(B, Nq, num_heads, D).transpose(0, 2, 1, 3)
    kv = x_kv @ wkv
    k = kv[..., :C].reshape(B, Nkv, num_heads, D).transpose(0, 2, 1, 3)
    v = kv[..., C:].reshape(B, Nkv, num_heads, D).transpose(0, 2, 1, 3)

    attn = jax.nn.softmax((q * scale) @ jnp.swapaxes(k, -1, -2), axis=-1)
    x = (attn @ v).transpose(0, 2, 1, 3).reshape(B, Nq, C)
    return x @ wproj + bproj


if __name__ == "__main__":
    # Small shapes consistent with the module: dim C=32, num_heads=8 (head_dim=4).
    B, Nq, Nkv, C, num_heads = 2, 8, 16, 32, 8

    key = jax.random.PRNGKey(0)
    k_xq, k_xkv, k_wq, k_wkv, k_wp, k_bp = jax.random.split(key, 6)

    x_q = jax.random.normal(k_xq, (B, Nq, C), dtype=jnp.float32)
    x_kv = jax.random.normal(k_xkv, (B, Nkv, C), dtype=jnp.float32)

    # Deterministic synthetic parameters (Linear weights stored as (in, out)).
    wq = jax.random.normal(k_wq, (C, C), dtype=jnp.float32) * 0.05
    wkv = jax.random.normal(k_wkv, (C, 2 * C), dtype=jnp.float32) * 0.05
    wproj = jax.random.normal(k_wp, (C, C), dtype=jnp.float32) * 0.05
    bproj = jax.random.normal(k_bp, (C,), dtype=jnp.float32) * 0.05

    out = cross_window_attention(x_q, x_kv, wq, wkv, wproj, bproj,
                                 num_heads=num_heads)
    out = jax.block_until_ready(out)

    ref = _reference(x_q, x_kv, wq, wkv, wproj, bproj, num_heads=num_heads)
    assert out.shape == (B, Nq, C)
    # Tolerance accounts for bf16 matmul operands (f32 accumulation) in the kernel.
    assert jnp.allclose(out, ref, atol=1e-2, rtol=1e-2), "mismatch vs reference"

    print("KERNEL_OK")
</pallas_src>

<mosaic_0001>
module attributes {stable_mosaic.version = 11 : i64} {
  func.func @_cross_window_attn_kernel(%arg0: i32, %arg1: memref<2x8x32xf32, #tpu.memory_space<vmem>>, %arg2: memref<2x16x32xf32, #tpu.memory_space<vmem>>, %arg3: memref<32x96xbf16, #tpu.memory_space<vmem>>, %arg4: memref<32x32xbf16, #tpu.memory_space<vmem>>, %arg5: memref<1x32xf32, #tpu.memory_space<vmem>>, %arg6: memref<128x32xbf16, #tpu.memory_space<vmem>>, %arg7: memref<2x8x32xf32, #tpu.memory_space<vmem>>) attributes {dimension_semantics = [#tpu.dimension_semantics<parallel>], iteration_bounds = array<i64: 1>, scalar_prefetch = 0 : i64, scratch_operands = 0 : i64, tpu.core_type = #tpu.core_type<tc>, window_params = [{transform_indices = @transform_0, window_bounds = array<i64: 2, 8, 32>}, {transform_indices = @transform_1, window_bounds = array<i64: 2, 16, 32>}, {pipeline_mode = #tpu.pipeline_mode<synchronous>, transform_indices = @transform_2, window_bounds = array<i64: 32, 96>}, {pipeline_mode = #tpu.pipeline_mode<synchronous>, transform_indices = @transform_3, window_bounds = array<i64: 32, 32>}, {pipeline_mode = #tpu.pipeline_mode<synchronous>, transform_indices = @transform_4, window_bounds = array<i64: 1, 32>}, {pipeline_mode = #tpu.pipeline_mode<synchronous>, transform_indices = @transform_5, window_bounds = array<i64: 128, 32>}, {transform_indices = @transform_6, window_bounds = array<i64: 2, 8, 32>}]} {
    %c0 = arith.constant 0 : index
    %c0_0 = arith.constant 0 : index
    %c0_1 = arith.constant 0 : index
    %0 = vector.load %arg1[%c0, %c0_0, %c0_1] : memref<2x8x32xf32, #tpu.memory_space<vmem>>, vector<2x8x32xf32>
    %1 = arith.truncf %0 : vector<2x8x32xf32> to vector<2x8x32xbf16>
    %2 = vector.shape_cast %1 : vector<2x8x32xbf16> to vector<16x32xbf16>
    %c0_2 = arith.constant 0 : index
    %c0_3 = arith.constant 0 : index
    %c0_4 = arith.constant 0 : index
    %3 = vector.load %arg2[%c0_2, %c0_3, %c0_4] : memref<2x16x32xf32, #tpu.memory_space<vmem>>, vector<2x16x32xf32>
    %4 = arith.truncf %3 : vector<2x16x32xf32> to vector<2x16x32xbf16>
    %5 = vector.shape_cast %4 : vector<2x16x32xbf16> to vector<32x32xbf16>
    %6 = tpu.concatenate %2, %5 in 0 : vector<16x32xbf16>, vector<32x32xbf16> -> vector<48x32xbf16>
    %c0_5 = arith.constant 0 : index
    %c0_6 = arith.constant 0 : index
    %7 = vector.load %arg3[%c0_5, %c0_6] : memref<32x96xbf16, #tpu.memory_space<vmem>>, vector<32x96xbf16>
    %cst = arith.constant dense<0.000000e+00> : vector<48x96xf32>
    %8 = tpu.matmul %6, %7, %cst {dimension_numbers = #tpu.dot_dimension_numbers<[1], [0], [0], [1], [0, 0, 1, 1], [], []>} : vector<48x32xbf16>, vector<32x96xbf16>, vector<48x96xf32> -> vector<48x96xf32>
    %9 = vector.extract_strided_slice %8 {offsets = [0, 0], sizes = [16, 32], strides = [1, 1]} : vector<48x96xf32> to vector<16x32xf32>
    %10 = vector.extract_strided_slice %8 {offsets = [16, 32], sizes = [32, 32], strides = [1, 1]} : vector<48x96xf32> to vector<32x32xf32>
    %11 = vector.extract_strided_slice %8 {offsets = [16, 64], sizes = [32, 32], strides = [1, 1]} : vector<48x96xf32> to vector<32x32xf32>
    %12 = arith.truncf %9 : vector<16x32xf32> to vector<16x32xbf16>
    %13 = vector.shape_cast %12 : vector<16x32xbf16> to vector<2x8x32xbf16>
    %14 = arith.truncf %10 : vector<32x32xf32> to vector<32x32xbf16>
    %15 = vector.shape_cast %14 : vector<32x32xbf16> to vector<2x16x32xbf16>
    %16 = arith.truncf %11 : vector<32x32xf32> to vector<32x32xbf16>
    %17 = vector.shape_cast %16 : vector<32x32xbf16> to vector<2x16x32xbf16>
    %c0_7 = arith.constant 0 : index
    %c0_8 = arith.constant 0 : index
    %18 = vector.load %arg6[%c0_7, %c0_8] : memref<128x32xbf16, #tpu.memory_space<vmem>>, vector<128x32xbf16>
    %19 = tpu.concatenate %15, %15, %15, %15, %15, %15, %15, %15 in 1 : vector<2x16x32xbf16>, vector<2x16x32xbf16>, vector<2x16x32xbf16>, vector<2x16x32xbf16>, vector<2x16x32xbf16>, vector<2x16x32xbf16>, vector<2x16x32xbf16>, vector<2x16x32xbf16> -> vector<2x128x32xbf16>
    %20 = vector.shape_cast %18 : vector<128x32xbf16> to vector<1x128x32xbf16>
    %21 = vector.broadcast %20 : vector<1x128x32xbf16> to vector<2x128x32xbf16>
    %22 = arith.mulf %19, %21 : vector<2x128x32xbf16>
    %23 = tpu.concatenate %17, %17, %17, %17, %17, %17, %17, %17 in 1 : vector<2x16x32xbf16>, vector<2x16x32xbf16>, vector<2x16x32xbf16>, vector<2x16x32xbf16>, vector<2x16x32xbf16>, vector<2x16x32xbf16>, vector<2x16x32xbf16>, vector<2x16x32xbf16> -> vector<2x128x32xbf16>
    %24 = vector.shape_cast %18 : vector<128x32xbf16> to vector<1x128x32xbf16>
    %25 = vector.broadcast %24 : vector<1x128x32xbf16> to vector<2x128x32xbf16>
    %26 = arith.mulf %23, %25 : vector<2x128x32xbf16>
    "tpu.trace_start"() <{level = 10 : i32, message = "bqc,bkc->bqk"}> : () -> ()
    %cst_9 = arith.constant dense<0.000000e+00> : vector<2x8x128xf32>
    %27 = tpu.matmul %13, %22, %cst_9 {dimension_numbers = #tpu.dot_dimension_numbers<[2], [2], [1], [1], [0, 0, 0, 1, 1, 1], [0], [0]>} : vector<2x8x32xbf16>, vector<2x128x32xbf16>, vector<2x8x128xf32> -> vector<2x8x128xf32>
    "tpu.trace_stop"() : () -> ()
    %cst_10 = arith.constant dense<0xFF800000> : vector<2x8xf32>
    %28 = vector.multi_reduction <maximumf>, %27, %cst_10 [2] : vector<2x8x128xf32> to vector<2x8xf32>
    %29 = vector.shape_cast %28 : vector<2x8xf32> to vector<2x8x1xf32>
    %30 = vector.broadcast %29 : vector<2x8x1xf32> to vector<2x8x128xf32>
    %31 = arith.subf %27, %30 : vector<2x8x128xf32>
    %32 = math.exp %31 : vector<2x8x128xf32>
    %33 = arith.truncf %32 : vector<2x8x128xf32> to vector<2x8x128xbf16>
    "tpu.trace_start"() <{level = 10 : i32, message = "bqk,bkc->bqc"}> : () -> ()
    %cst_11 = arith.constant dense<0.000000e+00> : vector<2x8x32xf32>
    %34 = tpu.matmul %33, %26, %cst_11 {dimension_numbers = #tpu.dot_dimension_numbers<[2], [1], [1], [2], [0, 0, 0, 1, 1, 2], [0], [0]>} : vector<2x8x128xbf16>, vector<2x128x32xbf16>, vector<2x8x32xf32> -> vector<2x8x32xf32>
    "tpu.trace_stop"() : () -> ()
    %35 = vector.shape_cast %34 : vector<2x8x32xf32> to vector<16x32xf32>
    %36 = vector.shape_cast %33 : vector<2x8x128xbf16> to vector<16x128xbf16>
    %cst_12 = arith.constant dense<0.000000e+00> : vector<16x32xf32>
    %37 = tpu.matmul %36, %18, %cst_12 {dimension_numbers = #tpu.dot_dimension_numbers<[1], [0], [0], [1], [0, 0, 1, 1], [], []>} : vector<16x128xbf16>, vector<128x32xbf16>, vector<16x32xf32> -> vector<16x32xf32>
    %cst_13 = arith.constant 1.000000e-30 : f32
    %38 = vector.broadcast %cst_13 : f32 to vector<16x32xf32>
    %39 = arith.maximumf %37, %38 : vector<16x32xf32>
    %40 = tpu.reciprocal %39 {approx = true} : vector<16x32xf32> -> vector<16x32xf32>
    %41 = arith.mulf %35, %40 : vector<16x32xf32>
    %42 = arith.truncf %41 : vector<16x32xf32> to vector<16x32xbf16>
    %c0_14 = arith.constant 0 : index
    %c0_15 = arith.constant 0 : index
    %43 = vector.load %arg4[%c0_14, %c0_15] : memref<32x32xbf16, #tpu.memory_space<vmem>>, vector<32x32xbf16>
    %cst_16 = arith.constant dense<0.000000e+00> : vector<16x32xf32>
    %44 = tpu.matmul %42, %43, %cst_16 {dimension_numbers = #tpu.dot_dimension_numbers<[1], [0], [0], [1], [0, 0, 1, 1], [], []>} : vector<16x32xbf16>, vector<32x32xbf16>, vector<16x32xf32> -> vector<16x32xf32>
    %c0_17 = arith.constant 0 : index
    %c0_18 = arith.constant 0 : index
    %45 = vector.load %arg5[%c0_17, %c0_18] : memref<1x32xf32, #tpu.memory_space<vmem>>, vector<1x32xf32>
    %46 = vector.broadcast %45 : vector<1x32xf32> to vector<16x32xf32>
    %47 = arith.addf %44, %46 : vector<16x32xf32>
    %48 = vector.shape_cast %47 : vector<16x32xf32> to vector<2x8x32xf32>
    %c0_19 = arith.constant 0 : index
    %c0_20 = arith.constant 0 : index
    %c0_21 = arith.constant 0 : index
    %49 = vector.load %arg7[%c0_19, %c0_20, %c0_21] : memref<2x8x32xf32, #tpu.memory_space<vmem>>, vector<2x8x32xf32>
    tpu.vector_store %arg7[%c0_19, %c0_20, %c0_21], %48 {strides = array<i32>} : memref<2x8x32xf32, #tpu.memory_space<vmem>>, vector<2x8x32xf32>,
    return
  }
  func.func @transform_0(%arg0: i32) -> (i32, i32, i32) {
    %c0_i32 = arith.constant 0 : i32
    %c0_i32_0 = arith.constant 0 : i32
    %c0_i32_1 = arith.constant 0 : i32
    return %arg0, %c0_i32, %c0_i32_0 : i32, i32, i32
  }
  func.func @transform_1(%arg0: i32) -> (i32, i32, i32) {
    %c0_i32 = arith.constant 0 : i32
    %c0_i32_0 = arith.constant 0 : i32
    %c0_i32_1 = arith.constant 0 : i32
    return %arg0, %c0_i32, %c0_i32_0 : i32, i32, i32
  }
  func.func @transform_2(%arg0: i32) -> (i32, i32) {
    %c0_i32 = arith.constant 0 : i32
    %c0_i32_0 = arith.constant 0 : i32
    %c0_i32_1 = arith.constant 0 : i32
    return %c0_i32, %c0_i32_0 : i32, i32
  }
  func.func @transform_3(%arg0: i32) -> (i32, i32) {
    %c0_i32 = arith.constant 0 : i32
    %c0_i32_0 = arith.constant 0 : i32
    %c0_i32_1 = arith.constant 0 : i32
    return %c0_i32, %c0_i32_0 : i32, i32
  }
  func.func @transform_4(%arg0: i32) -> (i32, i32) {
    %c0_i32 = arith.constant 0 : i32
    %c0_i32_0 = arith.constant 0 : i32
    %c0_i32_1 = arith.constant 0 : i32
    return %c0_i32, %c0_i32_0 : i32, i32
  }
  func.func @transform_5(%arg0: i32) -> (i32, i32) {
    %c0_i32 = arith.constant 0 : i32
    %c0_i32_0 = arith.constant 0 : i32
    %c0_i32_1 = arith.constant 0 : i32
    return %c0_i32, %c0_i32_0 : i32, i32
  }
  func.func @transform_6(%arg0: i32) -> (i32, i32, i32) {
    %c0_i32 = arith.constant 0 : i32
    %c0_i32_0 = arith.constant 0 : i32
    %c0_i32_1 = arith.constant 0 : i32
    return %arg0, %c0_i32, %c0_i32_0 : i32, i32, i32
  }
}

</mosaic_0001>

<llo_original>
// kernel: tpu_custom_call.1
$region0: #{tpu_custom_call.1}
  #allocation0 [shape = 'u32[]', space=smem, size = 0x4, offset = 0x4, fixed_abs, tag = 'smem constant byte address 0x4 - core index']
  #allocation1 [shape = 'u32[72,128]{1,0:T(1,128)}', space=vmem, size = 0x9000, scoped, tag = 'internal scratch']
  %s0 = inlined_call_operand.vmem [shape: f32[2,8,32], index: 0, kind: input, shape index: {}]
  %s1 = inlined_call_operand.vmem [shape: f32[2,16,32], index: 1, kind: input, shape index: {}]
  %s2 = inlined_call_operand.vmem [shape: bf16[32,96], index: 2, kind: input, shape index: {}]
  %s3 = inlined_call_operand.vmem [shape: bf16[32,32], index: 3, kind: input, shape index: {}]
  %s4 = inlined_call_operand.vmem [shape: f32[1,32], index: 4, kind: input, shape index: {}]
  %s5 = inlined_call_operand.vmem [shape: bf16[128,32], index: 5, kind: input, shape index: {}]
  %s6 = inlined_call_operand.hbm [shape: f32[2,8,32], index: 6, kind: output, shape index: {}]
  %s7 = sld [smem:[#allocation0]]
  $region34: #{tpu_custom_call.1} parent=0
    _
  %s9 = ssub.s32 1, %s7
  %s10 = scalar_select 0, %s9, %s7
  $region1: #{tpu_custom_call.1} parent=0
    #allocation2 [shape = 'u8[8192]{0}', space=vmem, size = 0x2000, scoped, tag = 'output window, operand 0, single buffered']
    #allocation3 [shape = 's32[1]{0}', space=sflag, size = 0x4, scoped, tag = 'scoped memory for tpu_custom_call.1']
    %11 = vsyncpa [#allocation3], 0
    // Predicated region
    $region2: #{tpu_custom_call.1} parent=1 // pred_check
      _
    $region3: #{tpu_custom_call.1} parent=1 // pred_check_branch
      %13 = sbr.rel (0) target = $region5
    $region4: #{tpu_custom_call.1} parent=1 // pred_region
      _
    $region5: #{tpu_custom_call.1} parent=1 // pred_fallthru
      _
    // Predicated region
    $region6: #{tpu_custom_call.1} parent=1 // pred_check
      _
    $region7: #{tpu_custom_call.1} parent=1 // pred_check_branch
      %15 = sbr.rel (0) target = $region9
    $region8: #{tpu_custom_call.1} parent=1 // pred_region
      _
    $region9: #{tpu_custom_call.1} parent=1 // pred_fallthru
      _
    // Predicated region
    $region10: #{tpu_custom_call.1} parent=1 // pred_check
      _
    $region11: #{tpu_custom_call.1} parent=1 // pred_check_branch
      %17 = sbr.rel (0) target = $region13
    $region12: #{tpu_custom_call.1} parent=1 // pred_region
      _
    $region13: #{tpu_custom_call.1} parent=1 // pred_fallthru
      _
    // Predicated region
    $region14: #{tpu_custom_call.1} parent=1 // pred_check
      _
    $region15: #{tpu_custom_call.1} parent=1 // pred_check_branch
      %19 = sbr.rel (0) target = $region17
    $region16: #{tpu_custom_call.1} parent=1 // pred_region
      _
    $region17: #{tpu_custom_call.1} parent=1 // pred_fallthru
      _
    // Predicated region
    $region18: #{tpu_custom_call.1} parent=1 // pred_check
      _
    $region19: #{tpu_custom_call.1} parent=1 // pred_check_branch
      %21 = sbr.rel (0) target = $region21
    $region20: #{tpu_custom_call.1} parent=1 // pred_region
      _
    $region21: #{tpu_custom_call.1} parent=1 // pred_fallthru
      _
    // Predicated region
    $region22: #{tpu_custom_call.1} parent=1 // pred_check
      _
    $region23: #{tpu_custom_call.1} parent=1 // pred_check_branch
      %23 = sbr.rel (0) target = $region25
    $region24: #{tpu_custom_call.1} parent=1 // pred_region
      _
    $region25: #{tpu_custom_call.1} parent=1 // pred_fallthru
      _
    %v25 = vld [vmem:[%s0] sm:$0xff]
    %v26 = vld [vmem:[%s0 + $0x8] sm:$0xff]
    %v27 = vpack.c.bf16 %v25, %v25
    %v28 = vpack.c.bf16 %v26, %v26
    %v29 = vld [vmem:[%s1] sm:$0xff]
    %v30 = vld [vmem:[%s1 + $0x8] sm:$0xff]
    %v31 = vld [vmem:[%s1 + $0x10] sm:$0xff]
    %v32 = vld [vmem:[%s1 + $0x18] sm:$0xff]
    %v33 = vpack.c.bf16 %v29, %v29
    %v34 = vpack.c.bf16 %v30, %v30
    %v35 = vpack.c.bf16 %v31, %v31
    %v36 = vpack.c.bf16 %v32, %v32
    %v39 = vunpack.c.l.b16 %v27
    %v40 = vunpack.c.l.b16 %v28
    %v41 = vpack.c.b16 %v40, %v39
    %v46 = vunpack.c.l.b16 %v33
    %v47 = vunpack.c.l.b16 %v34
    %v48 = vunpack.c.l.b16 %v35
    %v49 = vunpack.c.l.b16 %v36
    %v50 = vpack.c.b16 %v47, %v46
    %v51 = vpack.c.b16 %v49, %v48
    %v52 = vld [vmem:[%s2] sm:$0xf]
    %v53 = vld [vmem:[%s2 + $0x4] sm:$0xf]
    %v54 = vld [vmem:[%s2 + $0x8] sm:$0xf]
    %v55 = vld [vmem:[%s2 + $0xc] sm:$0xf]
    %v60 = vunpack.c.l.b16 %v52
    %v61 = vunpack.c.l.b16 %v53
    %v62 = vunpack.c.l.b16 %v54
    %v63 = vunpack.c.l.b16 %v55
    %v64 = vpack.c.b16 %v61, %v60
    %v65 = vpack.c.b16 %v63, %v62
    %vm68 = vcmask 261120
    %v70 = vsel %vm68, %v41, 0
    %v73 = vsel %vm68, %v50, 0
    %v76 = vsel %vm68, %v51, 0
    %78 = vmatpush.bf16.msra.mxu0 0
    %79 = vmatpush.bf16.msra.mxu0 0
    %80 = vmatpush.bf16.msra.mxu0 0
    %81 = vmatpush.bf16.msra.mxu0 0
    %82 = vmatpush.bf16.msra.mxu0 0
    %83 = vmatpush.bf16.msra.mxu0 0
    %84 = vmatpush.bf16.msra.mxu0 %v65
    %85 = vmatpush.bf16.msra.mxu0 %v64
    %86 = vmatmul.bf16.gmra.mxu0 %v70
    %v87 = vpop.f32.mrf.mxu0
    %v88 = vadd.f32 0.0, %v87
    %v89 = vpop.f32.mrf.mxu0
    %v90 = vadd.f32 0.0, %v89
    %91 = vmatmul.bf16.gmra.mxu0 %v73
    %v92 = vpop.f32.mrf.mxu0
    %v93 = vadd.f32 0.0, %v92
    %v94 = vpop.f32.mrf.mxu0
    %v95 = vadd.f32 0.0, %v94
    %96 = vmatmul.bf16.gmra.mxu0 %v76
    %v97 = vpop.f32.mrf.mxu0
    %v98 = vadd.f32 0.0, %v97
    %v99 = vpop.f32.mrf.mxu0
    %v100 = vadd.f32 0.0, %v99
    %101 = vdwg.mxu0
    %v102 = vpack.c.bf16 %v88, %v88
    %v103 = vpack.c.bf16 %v90, %v90
    %v104 = vpack.c.bf16 %v93, %v93
    %v105 = vpack.c.bf16 %v95, %v95
    %v106 = vpack.c.bf16 %v98, %v98
    %v107 = vpack.c.bf16 %v100, %v100
    %v108 = vld [vmem:[%s5] sm:$0xf]
    %v109 = vld [vmem:[%s5 + $0x4] sm:$0xf]
    %v110 = vld [vmem:[%s5 + $0x8] sm:$0xf]
    %v111 = vld [vmem:[%s5 + $0xc] sm:$0xf]
    %v112 = vld [vmem:[%s5 + $0x10] sm:$0xf]
    %v113 = vld [vmem:[%s5 + $0x14] sm:$0xf]
    %v114 = vld [vmem:[%s5 + $0x18] sm:$0xf]
    %v115 = vld [vmem:[%s5 + $0x1c] sm:$0xf]
    %v116 = vld [vmem:[%s5 + $0x20] sm:$0xf]
    %v117 = vld [vmem:[%s5 + $0x24] sm:$0xf]
    %v118 = vld [vmem:[%s5 + $0x28] sm:$0xf]
    %v119 = vld [vmem:[%s5 + $0x2c] sm:$0xf]
    %v120 = vld [vmem:[%s5 + $0x30] sm:$0xf]
    %v121 = vld [vmem:[%s5 + $0x34] sm:$0xf]
    %v122 = vld [vmem:[%s5 + $0x38] sm:$0xf]
    %v123 = vld [vmem:[%s5 + $0x3c] sm:$0xf]
    %v128 = vunpack.c.l.b16 %v104
    %v129 = vunpack.c.l.b16 %v105
    %v130 = vunpack.c.l.b16 %v106
    %v131 = vunpack.c.l.b16 %v107
    %v132 = vpack.c.b16 %v129, %v128
    %v133 = vpack.c.b16 %v131, %v130
    %v136 = vunpack.c.l.bf16 %v132
    %v137 = vunpack.c.h.bf16 %v132
    %v138 = vunpack.c.l.bf16 %v133
    %v139 = vunpack.c.h.bf16 %v133
    %v140 = vunpack.c.l.bf16 %v108
    %v141 = vunpack.c.l.bf16 %v109
    %v142 = vunpack.c.l.bf16 %v110
    %v143 = vunpack.c.l.bf16 %v111
    %v144 = vunpack.c.l.bf16 %v112
    %v145 = vunpack.c.l.bf16 %v113
    %v146 = vunpack.c.l.bf16 %v114
    %v147 = vunpack.c.l.bf16 %v115
    %v148 = vunpack.c.l.bf16 %v116
    %v149 = vunpack.c.l.bf16 %v117
    %v150 = vunpack.c.l.bf16 %v118
    %v151 = vunpack.c.l.bf16 %v119
    %v152 = vunpack.c.l.bf16 %v120
    %v153 = vunpack.c.l.bf16 %v121
    %v154 = vunpack.c.l.bf16 %v122
    %v155 = vunpack.c.l.bf16 %v123
    %172 = vrot.lane.b32.xlu0 %v140, 32
    %v173 = vpop.permute.xlu0 %172
    %174 = vrot.lane.b32.xlu0 %v141, 32
    %v175 = vpop.permute.xlu0 %174
    %176 = vrot.lane.b32.xlu0 %v142, 32
    %v177 = vpop.permute.xlu0 %176
    %178 = vrot.lane.b32.xlu0 %v143, 32
    %v179 = vpop.permute.xlu0 %178
    %180 = vrot.lane.b32.xlu0 %v144, 32
    %v181 = vpop.permute.xlu0 %180
    %182 = vrot.lane.b32.xlu0 %v145, 32
    %v183 = vpop.permute.xlu0 %182
    %184 = vrot.lane.b32.xlu0 %v146, 32
    %v185 = vpop.permute.xlu0 %184
    %186 = vrot.lane.b32.xlu0 %v147, 32
    %v187 = vpop.permute.xlu0 %186
    %188 = vrot.lane.b32.xlu0 %v148, 32
    %v189 = vpop.permute.xlu0 %188
    %190 = vrot.lane.b32.xlu0 %v149, 32
    %v191 = vpop.permute.xlu0 %190
    %192 = vrot.lane.b32.xlu0 %v150, 32
    %v193 = vpop.permute.xlu0 %192
    %194 = vrot.lane.b32.xlu0 %v151, 32
    %v195 = vpop.permute.xlu0 %194
    %196 = vrot.lane.b32.xlu0 %v152, 32
    %v197 = vpop.permute.xlu0 %196
    %198 = vrot.lane.b32.xlu0 %v153, 32
    %v199 = vpop.permute.xlu0 %198
    %200 = vrot.lane.b32.xlu0 %v154, 32
    %v201 = vpop.permute.xlu0 %200
    %202 = vrot.lane.b32.xlu0 %v155, 32
    %v203 = vpop.permute.xlu0 %202
    %v220 = vmul.f32 %v136, %v173
    %v221 = vmul.f32 %v137, %v175
    %v222 = vmul.f32 %v136, %v177
    %v223 = vmul.f32 %v137, %v179
    %v224 = vmul.f32 %v136, %v181
    %v225 = vmul.f32 %v137, %v183
    %v226 = vmul.f32 %v136, %v185
    %v227 = vmul.f32 %v137, %v187
    %v228 = vmul.f32 %v136, %v189
    %v229 = vmul.f32 %v137, %v191
    %v230 = vmul.f32 %v136, %v193
    %v231 = vmul.f32 %v137, %v195
    %v232 = vmul.f32 %v136, %v197
    %v233 = vmul.f32 %v137, %v199
    %v234 = vmul.f32 %v136, %v201
    %v235 = vmul.f32 %v137, %v203
    %v236 = vmul.f32 %v138, %v173
    %v237 = vmul.f32 %v139, %v175
    %v238 = vmul.f32 %v138, %v177
    %v239 = vmul.f32 %v139, %v179
    %v240 = vmul.f32 %v138, %v181
    %v241 = vmul.f32 %v139, %v183
    %v242 = vmul.f32 %v138, %v185
    %v243 = vmul.f32 %v139, %v187
    %v244 = vmul.f32 %v138, %v189
    %v245 = vmul.f32 %v139, %v191
    %v246 = vmul.f32 %v138, %v193
    %v247 = vmul.f32 %v139, %v195
    %v248 = vmul.f32 %v138, %v197
    %v249 = vmul.f32 %v139, %v199
    %v250 = vmul.f32 %v138, %v201
    %v251 = vmul.f32 %v139, %v203
    %v252 = vpack.c.bf16 %v220, %v220
    %v253 = vpack.c.bf16 %v221, %v221
    %v254 = vpack.c.bf16 %v222, %v222
    %v255 = vpack.c.bf16 %v223, %v223
    %v256 = vpack.c.bf16 %v224, %v224
    %v257 = vpack.c.bf16 %v225, %v225
    %v258 = vpack.c.bf16 %v226, %v226
    %v259 = vpack.c.bf16 %v227, %v227
    %v260 = vpack.c.bf16 %v228, %v228
    %v261 = vpack.c.bf16 %v229, %v229
    %v262 = vpack.c.bf16 %v230, %v230
    %v263 = vpack.c.bf16 %v231, %v231
    %v264 = vpack.c.bf16 %v232, %v232
    %v265 = vpack.c.bf16 %v233, %v233
    %v266 = vpack.c.bf16 %v234, %v234
    %v267 = vpack.c.bf16 %v235, %v235
    %v268 = vpack.c.bf16 %v236, %v236
    %v269 = vpack.c.bf16 %v237, %v237
    %v270 = vpack.c.bf16 %v238, %v238
    %v271 = vpack.c.bf16 %v239, %v239
    %v272 = vpack.c.bf16 %v240, %v240
    %v273 = vpack.c.bf16 %v241, %v241
    %v274 = vpack.c.bf16 %v242, %v242
    %v275 = vpack.c.bf16 %v243, %v243
    %v276 = vpack.c.bf16 %v244, %v244
    %v277 = vpack.c.bf16 %v245, %v245
    %v278 = vpack.c.bf16 %v246, %v246
    %v279 = vpack.c.bf16 %v247, %v247
    %v280 = vpack.c.bf16 %v248, %v248
    %v281 = vpack.c.bf16 %v249, %v249
    %v282 = vpack.c.bf16 %v250, %v250
    %v283 = vpack.c.bf16 %v251, %v251
    %284 = vrot.lane.b32.xlu0 %v140, 64
    %v285 = vpop.permute.xlu0 %284
    %286 = vrot.lane.b32.xlu0 %v141, 64
    %v287 = vpop.permute.xlu0 %286
    %288 = vrot.lane.b32.xlu0 %v142, 64
    %v289 = vpop.permute.xlu0 %288
    %290 = vrot.lane.b32.xlu0 %v143, 64
    %v291 = vpop.permute.xlu0 %290
    %292 = vrot.lane.b32.xlu0 %v144, 64
    %v293 = vpop.permute.xlu0 %292
    %294 = vrot.lane.b32.xlu0 %v145, 64
    %v295 = vpop.permute.xlu0 %294
    %296 = vrot.lane.b32.xlu0 %v146, 64
    %v297 = vpop.permute.xlu0 %296
    %298 = vrot.lane.b32.xlu0 %v147, 64
    %v299 = vpop.permute.xlu0 %298
    %300 = vrot.lane.b32.xlu0 %v148, 64
    %v301 = vpop.permute.xlu0 %300
    %302 = vrot.lane.b32.xlu0 %v149, 64
    %v303 = vpop.permute.xlu0 %302
    %304 = vrot.lane.b32.xlu0 %v150, 64
    %v305 = vpop.permute.xlu0 %304
    %306 = vrot.lane.b32.xlu0 %v151, 64
    %v307 = vpop.permute.xlu0 %306
    %308 = vrot.lane.b32.xlu0 %v152, 64
    %v309 = vpop.permute.xlu0 %308
    %310 = vrot.lane.b32.xlu0 %v153, 64
    %v311 = vpop.permute.xlu0 %310
    %312 = vrot.lane.b32.xlu0 %v154, 64
    %v313 = vpop.permute.xlu0 %312
    %314 = vrot.lane.b32.xlu0 %v155, 64
    %v315 = vpop.permute.xlu0 %314
    %v332 = vmul.f32 %v136, %v285
    %v333 = vmul.f32 %v137, %v287
    %v334 = vmul.f32 %v136, %v289
    %v335 = vmul.f32 %v137, %v291
    %v336 = vmul.f32 %v136, %v293
    %v337 = vmul.f32 %v137, %v295
    %v338 = vmul.f32 %v136, %v297
    %v339 = vmul.f32 %v137, %v299
    %v340 = vmul.f32 %v136, %v301
    %v341 = vmul.f32 %v137, %v303
    %v342 = vmul.f32 %v136, %v305
    %v343 = vmul.f32 %v137, %v307
    %v344 = vmul.f32 %v136, %v309
    %v345 = vmul.f32 %v137, %v311
    %v346 = vmul.f32 %v136, %v313
    %v347 = vmul.f32 %v137, %v315
    %v348 = vmul.f32 %v138, %v285
    %v349 = vmul.f32 %v139, %v287
    %v350 = vmul.f32 %v138, %v289
    %v351 = vmul.f32 %v139, %v291
    %v352 = vmul.f32 %v138, %v293
    %v353 = vmul.f32 %v139, %v295
    %v354 = vmul.f32 %v138, %v297
    %v355 = vmul.f32 %v139, %v299
    %v356 = vmul.f32 %v138, %v301
    %v357 = vmul.f32 %v139, %v303
    %v358 = vmul.f32 %v138, %v305
    %v359 = vmul.f32 %v139, %v307
    %v360 = vmul.f32 %v138, %v309
    %v361 = vmul.f32 %v139, %v311
    %v362 = vmul.f32 %v138, %v313
    %v363 = vmul.f32 %v139, %v315
    %v364 = vpack.c.bf16 %v332, %v332
    %v365 = vpack.c.bf16 %v333, %v333
    %v366 = vpack.c.bf16 %v334, %v334
    %v367 = vpack.c.bf16 %v335, %v335
    %v368 = vpack.c.bf16 %v336, %v336
    %v369 = vpack.c.bf16 %v337, %v337
    %v370 = vpack.c.bf16 %v338, %v338
    %v371 = vpack.c.bf16 %v339, %v339
    %v372 = vpack.c.bf16 %v340, %v340
    %v373 = vpack.c.bf16 %v341, %v341
    %v374 = vpack.c.bf16 %v342, %v342
    %v375 = vpack.c.bf16 %v343, %v343
    %v376 = vpack.c.bf16 %v344, %v344
    %v377 = vpack.c.bf16 %v345, %v345
    %v378 = vpack.c.bf16 %v346, %v346
    %v379 = vpack.c.bf16 %v347, %v347
    %v380 = vpack.c.bf16 %v348, %v348
    %v381 = vpack.c.bf16 %v349, %v349
    %v382 = vpack.c.bf16 %v350, %v350
    %v383 = vpack.c.bf16 %v351, %v351
    %v384 = vpack.c.bf16 %v352, %v352
    %v385 = vpack.c.bf16 %v353, %v353
    %v386 = vpack.c.bf16 %v354, %v354
    %v387 = vpack.c.bf16 %v355, %v355
    %v388 = vpack.c.bf16 %v356, %v356
    %v389 = vpack.c.bf16 %v357, %v357
    %v390 = vpack.c.bf16 %v358, %v358
    %v391 = vpack.c.bf16 %v359, %v359
    %v392 = vpack.c.bf16 %v360, %v360
    %v393 = vpack.c.bf16 %v361, %v361
    %v394 = vpack.c.bf16 %v362, %v362
    %v395 = vpack.c.bf16 %v363, %v363
    %v412 = vunpack.c.l.b16 %v252
    %v413 = vunpack.c.l.b16 %v253
    %v414 = vunpack.c.l.b16 %v254
    %v415 = vunpack.c.l.b16 %v255
    %v416 = vunpack.c.l.b16 %v256
    %v417 = vunpack.c.l.b16 %v257
    %v418 = vunpack.c.l.b16 %v258
    %v419 = vunpack.c.l.b16 %v259
    %v420 = vunpack.c.l.b16 %v260
    %v421 = vunpack.c.l.b16 %v261
    %v422 = vunpack.c.l.b16 %v262
    %v423 = vunpack.c.l.b16 %v263
    %v424 = vunpack.c.l.b16 %v264
    %v425 = vunpack.c.l.b16 %v265
    %v426 = vunpack.c.l.b16 %v266
    %v427 = vunpack.c.l.b16 %v267
    %v428 = vpack.c.b16 %v413, %v412
    %v429 = vpack.c.b16 %v415, %v414
    %v430 = vpack.c.b16 %v417, %v416
    %v431 = vpack.c.b16 %v419, %v418
    %v432 = vpack.c.b16 %v421, %v420
    %v433 = vpack.c.b16 %v423, %v422
    %v434 = vpack.c.b16 %v425, %v424
    %v435 = vpack.c.b16 %v427, %v426
    %436 = vrot.lane.b32.xlu0 %v428, 96
    %v437 = vpop.permute.xlu0 %436
    %438 = vrot.lane.b32.xlu0 %v429, 96
    %v439 = vpop.permute.xlu0 %438
    %440 = vrot.lane.b32.xlu0 %v430, 96
    %v441 = vpop.permute.xlu0 %440
    %442 = vrot.lane.b32.xlu0 %v431, 96
    %v443 = vpop.permute.xlu0 %442
    %444 = vrot.lane.b32.xlu0 %v432, 96
    %v445 = vpop.permute.xlu0 %444
    %446 = vrot.lane.b32.xlu0 %v433, 96
    %v447 = vpop.permute.xlu0 %446
    %448 = vrot.lane.b32.xlu0 %v434, 96
    %v449 = vpop.permute.xlu0 %448
    %450 = vrot.lane.b32.xlu0 %v435, 96
    %v451 = vpop.permute.xlu0 %450
    %v453 = vsel %vm68, %v102, 0
    %v456 = vsel %vm68, %v437, 0
    %v459 = vsel %vm68, %v439, 0
    %v462 = vsel %vm68, %v441, 0
    %v465 = vsel %vm68, %v443, 0
    %v468 = vsel %vm68, %v445, 0
    %v471 = vsel %vm68, %v447, 0
    %v474 = vsel %vm68, %v449, 0
    %v477 = vsel %vm68, %v451, 0
    %479 = vmatpush.bf16.xpose.msra.mxu0 %v477
    %480 = vmatpush.bf16.xpose.msra.mxu0 %v474
    %481 = vmatpush.bf16.xpose.msra.mxu0 %v471
    %482 = vmatpush.bf16.xpose.msra.mxu0 %v468
    %483 = vmatpush.bf16.xpose.msra.mxu0 %v465
    %484 = vmatpush.bf16.xpose.msra.mxu0 %v462
    %485 = vmatpush.bf16.xpose.msra.mxu0 %v459
    %486 = vmatpush.bf16.xpose.msra.mxu0 %v456
    %487 = vmatmul.bf16.gmra.mxu0 %v453
    %v488 = vpop.f32.mrf.mxu0
    %v489 = vadd.f32 0.0, %v488
    %v490 = vpop.f32.mrf.mxu0
    %491 = vdwg.mxu0
    %v508 = vunpack.c.l.b16 %v268
    %v509 = vunpack.c.l.b16 %v269
    %v510 = vunpack.c.l.b16 %v270
    %v511 = vunpack.c.l.b16 %v271
    %v512 = vunpack.c.l.b16 %v272
    %v513 = vunpack.c.l.b16 %v273
    %v514 = vunpack.c.l.b16 %v274
    %v515 = vunpack.c.l.b16 %v275
    %v516 = vunpack.c.l.b16 %v276
    %v517 = vunpack.c.l.b16 %v277
    %v518 = vunpack.c.l.b16 %v278
    %v519 = vunpack.c.l.b16 %v279
    %v520 = vunpack.c.l.b16 %v280
    %v521 = vunpack.c.l.b16 %v281
    %v522 = vunpack.c.l.b16 %v282
    %v523 = vunpack.c.l.b16 %v283
    %v524 = vpack.c.b16 %v509, %v508
    %v525 = vpack.c.b16 %v511, %v510
    %v526 = vpack.c.b16 %v513, %v512
    %v527 = vpack.c.b16 %v515, %v514
    %v528 = vpack.c.b16 %v517, %v516
    %v529 = vpack.c.b16 %v519, %v518
    %v530 = vpack.c.b16 %v521, %v520
    %v531 = vpack.c.b16 %v523, %v522
    %532 = vrot.lane.b32.xlu0 %v524, 96
    %v533 = vpop.permute.xlu0 %532
    %534 = vrot.lane.b32.xlu0 %v525, 96
    %v535 = vpop.permute.xlu0 %534
    %536 = vrot.lane.b32.xlu0 %v526, 96
    %v537 = vpop.permute.xlu0 %536
    %538 = vrot.lane.b32.xlu0 %v527, 96
    %v539 = vpop.permute.xlu0 %538
    %540 = vrot.lane.b32.xlu0 %v528, 96
    %v541 = vpop.permute.xlu0 %540
    %542 = vrot.lane.b32.xlu0 %v529, 96
    %v543 = vpop.permute.xlu0 %542
    %544 = vrot.lane.b32.xlu0 %v530, 96
    %v545 = vpop.permute.xlu0 %544
    %546 = vrot.lane.b32.xlu0 %v531, 96
    %v547 = vpop.permute.xlu0 %546
    %v549 = vsel %vm68, %v103, 0
    %v552 = vsel %vm68, %v533, 0
    %v555 = vsel %vm68, %v535, 0
    %v558 = vsel %vm68, %v537, 0
    %v561 = vsel %vm68, %v539, 0
    %v564 = vsel %vm68, %v541, 0
    %v567 = vsel %vm68, %v543, 0
    %v570 = vsel %vm68, %v545, 0
    %v573 = vsel %vm68, %v547, 0
    %575 = vmatpush.bf16.xpose.msra.mxu0 %v573
    %576 = vmatpush.bf16.xpose.msra.mxu0 %v570
    %577 = vmatpush.bf16.xpose.msra.mxu0 %v567
    %578 = vmatpush.bf16.xpose.msra.mxu0 %v564
    %579 = vmatpush.bf16.xpose.msra.mxu0 %v561
    %580 = vmatpush.bf16.xpose.msra.mxu0 %v558
    %581 = vmatpush.bf16.xpose.msra.mxu0 %v555
    %582 = vmatpush.bf16.xpose.msra.mxu0 %v552
    %583 = vmatmul.bf16.gmra.mxu0 %v549
    %v584 = vpop.f32.mrf.mxu0
    %v585 = vadd.f32 0.0, %v584
    %v586 = vpop.f32.mrf.mxu0
    %587 = vdwg.mxu0
    %588 = vmax.xlane.f32.xlu0 %v489
    %v589 = vpop.xlane.xlu0 %588
    %590 = vmax.xlane.f32.xlu0 %v585
    %v591 = vpop.xlane.xlu0 %590
    %v592 = vsub.f32 %v489, %v589
    %v593 = vsub.f32 %v585, %v591
    %v594 = vmul.f32 %v592, 1.442695
    %v595 = vpow.pop %v594
    %v596 = vmul.f32 %v593, 1.442695
    %v597 = vpow.pop %v596
    %v598 = vpack.c.bf16 %v595, %v595
    %v599 = vpack.c.bf16 %v597, %v597
    %v616 = vunpack.c.l.b16 %v364
    %v617 = vunpack.c.l.b16 %v365
    %v618 = vunpack.c.l.b16 %v366
    %v619 = vunpack.c.l.b16 %v367
    %v620 = vunpack.c.l.b16 %v368
    %v621 = vunpack.c.l.b16 %v369
    %v622 = vunpack.c.l.b16 %v370
    %v623 = vunpack.c.l.b16 %v371
    %v624 = vunpack.c.l.b16 %v372
    %v625 = vunpack.c.l.b16 %v373
    %v626 = vunpack.c.l.b16 %v374
    %v627 = vunpack.c.l.b16 %v375
    %v628 = vunpack.c.l.b16 %v376
    %v629 = vunpack.c.l.b16 %v377
    %v630 = vunpack.c.l.b16 %v378
    %v631 = vunpack.c.l.b16 %v379
    %v632 = vpack.c.b16 %v617, %v616
    %v633 = vpack.c.b16 %v619, %v618
    %v634 = vpack.c.b16 %v621, %v620
    %v635 = vpack.c.b16 %v623, %v622
    %v636 = vpack.c.b16 %v625, %v624
    %v637 = vpack.c.b16 %v627, %v626
    %v638 = vpack.c.b16 %v629, %v628
    %v639 = vpack.c.b16 %v631, %v630
    %640 = vrot.lane.b32.xlu0 %v632, 64
    %v641 = vpop.permute.xlu0 %640
    %642 = vrot.lane.b32.xlu0 %v633, 64
    %v643 = vpop.permute.xlu0 %642
    %644 = vrot.lane.b32.xlu0 %v634, 64
    %v645 = vpop.permute.xlu0 %644
    %646 = vrot.lane.b32.xlu0 %v635, 64
    %v647 = vpop.permute.xlu0 %646
    %648 = vrot.lane.b32.xlu0 %v636, 64
    %v649 = vpop.permute.xlu0 %648
    %650 = vrot.lane.b32.xlu0 %v637, 64
    %v651 = vpop.permute.xlu0 %650
    %652 = vrot.lane.b32.xlu0 %v638, 64
    %v653 = vpop.permute.xlu0 %652
    %654 = vrot.lane.b32.xlu0 %v639, 64
    %v655 = vpop.permute.xlu0 %654
    %664 = vmatpush.bf16.msra.mxu0 %v655
    %665 = vmatpush.bf16.msra.mxu0 %v653
    %666 = vmatpush.bf16.msra.mxu0 %v651
    %667 = vmatpush.bf16.msra.mxu0 %v649
    %668 = vmatpush.bf16.msra.mxu0 %v647
    %669 = vmatpush.bf16.msra.mxu0 %v645
    %670 = vmatpush.bf16.msra.mxu0 %v643
    %671 = vmatpush.bf16.msra.mxu0 %v641
    %672 = vmatmul.bf16.gmra.mxu0 %v598
    %v673 = vpop.f32.mrf.mxu0
    %v674 = vadd.f32 0.0, %v673
    %v675 = vpop.f32.mrf.mxu0
    %676 = vdwg.mxu0
    %v693 = vunpack.c.l.b16 %v380
    %v694 = vunpack.c.l.b16 %v381
    %v695 = vunpack.c.l.b16 %v382
    %v696 = vunpack.c.l.b16 %v383
    %v697 = vunpack.c.l.b16 %v384
    %v698 = vunpack.c.l.b16 %v385
    %v699 = vunpack.c.l.b16 %v386
    %v700 = vunpack.c.l.b16 %v387
    %v701 = vunpack.c.l.b16 %v388
    %v702 = vunpack.c.l.b16 %v389
    %v703 = vunpack.c.l.b16 %v390
    %v704 = vunpack.c.l.b16 %v391
    %v705 = vunpack.c.l.b16 %v392
    %v706 = vunpack.c.l.b16 %v393
    %v707 = vunpack.c.l.b16 %v394
    %v708 = vunpack.c.l.b16 %v395
    %v709 = vpack.c.b16 %v694, %v693
    %v710 = vpack.c.b16 %v696, %v695
    %v711 = vpack.c.b16 %v698, %v697
    %v712 = vpack.c.b16 %v700, %v699
    %v713 = vpack.c.b16 %v702, %v701
    %v714 = vpack.c.b16 %v704, %v703
    %v715 = vpack.c.b16 %v706, %v705
    %v716 = vpack.c.b16 %v708, %v707
    %717 = vrot.lane.b32.xlu0 %v709, 64
    %v718 = vpop.permute.xlu0 %717
    %719 = vrot.lane.b32.xlu0 %v710, 64
    %v720 = vpop.permute.xlu0 %719
    %721 = vrot.lane.b32.xlu0 %v711, 64
    %v722 = vpop.permute.xlu0 %721
    %723 = vrot.lane.b32.xlu0 %v712, 64
    %v724 = vpop.permute.xlu0 %723
    %725 = vrot.lane.b32.xlu0 %v713, 64
    %v726 = vpop.permute.xlu0 %725
    %727 = vrot.lane.b32.xlu0 %v714, 64
    %v728 = vpop.permute.xlu0 %727
    %729 = vrot.lane.b32.xlu0 %v715, 64
    %v730 = vpop.permute.xlu0 %729
    %731 = vrot.lane.b32.xlu0 %v716, 64
    %v732 = vpop.permute.xlu0 %731
    %741 = vmatpush.bf16.msra.mxu0 %v732
    %742 = vmatpush.bf16.msra.mxu0 %v730
    %743 = vmatpush.bf16.msra.mxu0 %v728
    %744 = vmatpush.bf16.msra.mxu0 %v726
    %745 = vmatpush.bf16.msra.mxu0 %v724
    %746 = vmatpush.bf16.msra.mxu0 %v722
    %747 = vmatpush.bf16.msra.mxu0 %v720
    %748 = vmatpush.bf16.msra.mxu0 %v718
    %749 = vmatmul.bf16.gmra.mxu0 %v599
    %v750 = vpop.f32.mrf.mxu0
    %v751 = vadd.f32 0.0, %v750
    %v752 = vpop.f32.mrf.mxu0
    %753 = vdwg.mxu0
    %v756 = vunpack.c.l.b16 %v598
    %v757 = vunpack.c.l.b16 %v599
    %v758 = vpack.c.b16 %v757, %v756
    %v776 = vunpack.c.l.b16 %v108
    %v777 = vunpack.c.l.b16 %v109
    %v778 = vunpack.c.l.b16 %v110
    %v779 = vunpack.c.l.b16 %v111
    %v780 = vunpack.c.l.b16 %v112
    %v781 = vunpack.c.l.b16 %v113
    %v782 = vunpack.c.l.b16 %v114
    %v783 = vunpack.c.l.b16 %v115
    %v784 = vunpack.c.l.b16 %v116
    %v785 = vunpack.c.l.b16 %v117
    %v786 = vunpack.c.l.b16 %v118
    %v787 = vunpack.c.l.b16 %v119
    %v788 = vunpack.c.l.b16 %v120
    %v789 = vunpack.c.l.b16 %v121
    %v790 = vunpack.c.l.b16 %v122
    %v791 = vunpack.c.l.b16 %v123
    %v792 = vpack.c.b16 %v777, %v776
    %v793 = vpack.c.b16 %v779, %v778
    %v794 = vpack.c.b16 %v781, %v780
    %v795 = vpack.c.b16 %v783, %v782
    %v796 = vpack.c.b16 %v785, %v784
    %v797 = vpack.c.b16 %v787, %v786
    %v798 = vpack.c.b16 %v789, %v788
    %v799 = vpack.c.b16 %v791, %v790
    %808 = vmatpush.bf16.msra.mxu0 %v799
    %809 = vmatpush.bf16.msra.mxu0 %v798
    %810 = vmatpush.bf16.msra.mxu0 %v797
    %811 = vmatpush.bf16.msra.mxu0 %v796
    %812 = vmatpush.bf16.msra.mxu0 %v795
    %813 = vmatpush.bf16.msra.mxu0 %v794
    %814 = vmatpush.bf16.msra.mxu0 %v793
    %815 = vmatpush.bf16.msra.mxu0 %v792
    %816 = vmatmul.bf16.gmra.mxu0 %v758
    %v817 = vpop.f32.mrf.mxu0
    %v818 = vadd.f32 0.0, %v817
    %v819 = vpop.f32.mrf.mxu0
    %v820 = vadd.f32 0.0, %v819
    %821 = vdwg.mxu0
    %v822 = vmax.f32 %v818, 1e-30
    %v823 = vmax.f32 %v820, 1e-30
    %v824 = vrcp.pop %v822
    %v825 = vrcp.pop %v823
    %v826 = vmul.f32 %v674, %v824
    %v827 = vmul.f32 %v751, %v825
    %v828 = vpack.c.bf16 %v827, %v826
    %v829 = vld [vmem:[%s3] sm:$0xf]
    %v830 = vld [vmem:[%s3 + $0x4] sm:$0xf]
    %v831 = vld [vmem:[%s3 + $0x8] sm:$0xf]
    %v832 = vld [vmem:[%s3 + $0xc] sm:$0xf]
    %v833 = vld [vmem:[%s4] sm:$0x1]
    %v835 = vperm.slane %v833, 0
    %v841 = vunpack.c.l.b16 %v829
    %v842 = vunpack.c.l.b16 %v830
    %v843 = vunpack.c.l.b16 %v831
    %v844 = vunpack.c.l.b16 %v832
    %v845 = vpack.c.b16 %v842, %v841
    %v846 = vpack.c.b16 %v844, %v843
    %v850 = vsel %vm68, %v828, 0
    %852 = vmatpush.bf16.msra.mxu0 0
    %853 = vmatpush.bf16.msra.mxu0 0
    %854 = vmatpush.bf16.msra.mxu0 0
    %855 = vmatpush.bf16.msra.mxu0 0
    %856 = vmatpush.bf16.msra.mxu0 0
    %857 = vmatpush.bf16.msra.mxu0 0
    %858 = vmatpush.bf16.msra.mxu0 %v846
    %859 = vmatpush.bf16.msra.mxu0 %v845
    %860 = vmatmul.bf16.gmra.mxu0 %v850
    %v861 = vpop.f32.mrf.mxu0
    %v862 = vadd.f32 %v835, %v861
    %v863 = vpop.f32.mrf.mxu0
    %v864 = vadd.f32 %v835, %v863
    %865 = vdwg.mxu0
    %866 = vst.msk [vmem:[#allocation2] sm:$0xff] %vm68, %v862
    %867 = vst.msk [vmem:[#allocation2 + $0x8] sm:$0xff] %vm68, %v864
    // Predicated region
    $region26: #{tpu_custom_call.1} parent=1 // pred_check
      _
    $region27: #{tpu_custom_call.1} parent=1 // pred_check_branch
      %869 = sbr.rel (0) target = $region29
    $region28: #{tpu_custom_call.1} parent=1 // pred_region
      %871 = vsyncadd [#allocation3], 0
      %s872 = sshll.u32 [#allocation2], 4
      %s873 = int_to_ptr.vmem [resolvable:$true] %s872
      %s874 = sshll.u32 %s6, 4
      %s875 = int_to_ptr.hbm [resolvable:$true] %s874
      %880 = dma.vmem_to_hbm [thread:$0]  %s873, 256, %s875, [#allocation3], 128, 128, 8
    $region29: #{tpu_custom_call.1} parent=1 // pred_fallthru
      _
    // Predicated region
    $region30: #{tpu_custom_call.1} parent=1 // pred_check
      _
    $region31: #{tpu_custom_call.1} parent=1 // pred_check_branch
      %882 = sbr.rel (0) target = $region33
    $region32: #{tpu_custom_call.1} parent=1 // pred_region
      %884 = dma.done [#allocation3], 256
    $region33: #{tpu_custom_call.1} parent=1 // pred_fallthru
      _
    %885 = vsyncpa [#allocation3], 1

</llo_original>
